<compile_context>
chip_gen: v7x
topology: tpu7x:2x2x1
jax: 0.10.0
libtpu: 0.0.40
codegen_flags: <defaults>
</compile_context>

<pallas_src>
import functools

import jax
import jax.numpy as jnp
from jax.experimental import pallas as pl
from jax.experimental.pallas import tpu as pltpu

_LANE = 128
_SUBLANE = 8


def _round_up(x, m):
    return ((x + m - 1) // m) * m


def _fused_mlp_kernel(x_ref, w_ref, b_ref, o_ref, h_ref, *, final_act):
    """One grid step = (batch tile i, layer l).

    h_ref (VMEM scratch) carries the activation across the layer axis; the
    HBM output tile is written only on the last layer.
    """
    layer = pl.program_id(1)
    last = pl.num_programs(1) - 1

    # Load the input batch tile into the resident activation at layer 0.
    @pl.when(layer == 0)
    def _():
        h_ref[...] = x_ref[...]

    # y = h @ W_l + b_l  (MXU, f32 accumulation; bias broadcast over rows)
    y = jnp.dot(h_ref[...], w_ref[0], preferred_element_type=jnp.float32)
    y = y + b_ref[0]

    # Hidden layers: ReLU (dropout is identity in eval mode); keep h in VMEM.
    @pl.when(layer != last)
    def _():
        h_ref[...] = jnp.maximum(y, 0.0)

    # Final layer: output activation, single HBM write.
    @pl.when(layer == last)
    def _():
        if final_act == "relu":
            out = jnp.maximum(y, 0.0)
        else:  # sigmoid via EUP exp + approx reciprocal (EUP slot ~free)
            out = pl.reciprocal(1.0 + jnp.exp(-y), approx=True)
        o_ref[...] = out.astype(o_ref.dtype)


def fused_mlp_forward(xp, w_stack, b_stack, *, batch_tile, final_act):
    """xp: (Bp, D) padded input; w_stack: (L, D, D); b_stack: (L, 1, D)."""
    Bp, D = xp.shape
    L = w_stack.shape[0]
    grid = (Bp // batch_tile, L)

    # Advisory cost estimate for XLA's scheduler.
    flops = 2 * Bp * L * D * D
    transcendentals = 2 * Bp * D if final_act == "sigmoid" else 0
    bytes_accessed = 4 * (Bp * D + L * D * D + L * D + Bp * D)

    # Explicit VMEM budget: double-buffered blocks + resident scratch, with
    # headroom, capped well under v7x's 64 MiB physical VMEM.
    block_bytes = 4 * (batch_tile * D + D * D + D + batch_tile * D)
    vmem_bytes = 2 * block_bytes + 4 * batch_tile * D
    vmem_bytes = int(min(max(2 * vmem_bytes, 4 * 1024 * 1024),
                         48 * 1024 * 1024))

    kernel = functools.partial(_fused_mlp_kernel, final_act=final_act)
    return pl.pallas_call(
        kernel,
        out_shape=jax.ShapeDtypeStruct((Bp, D), jnp.float32),
        grid=grid,
        in_specs=[
            pl.BlockSpec((batch_tile, D), lambda i, l: (i, 0)),  # x tile
            pl.BlockSpec((1, D, D), lambda i, l: (l, 0, 0)),     # W stack
            pl.BlockSpec((1, 1, D), lambda i, l: (l, 0, 0)),     # b stack
        ],
        out_specs=pl.BlockSpec((batch_tile, D), lambda i, l: (i, 0)),
        scratch_shapes=[pltpu.VMEM((batch_tile, D), jnp.float32)],
        compiler_params=pltpu.CompilerParams(
            dimension_semantics=("parallel", "arbitrary"),
            vmem_limit_bytes=vmem_bytes,
        ),
        cost_estimate=pl.CostEstimate(
            flops=flops,
            transcendentals=transcendentals,
            bytes_accessed=bytes_accessed,
        ),
    )(xp, w_stack, b_stack)


class MLPPallas:
    """Forward-pass mirror of the PyTorch MLP module (eval mode)."""

    def __init__(self, num_layers, input_dim, hidden_dim, output_dim,
                 act="sigmoid", key=None):
        if num_layers < 1:
            raise ValueError("number of layers should be positive!")
        self.num_layers = num_layers
        self.final_act = "relu" if act == "relu" else "sigmoid"
        self.input_dim = input_dim
        self.output_dim = output_dim

        if key is None:
            key = jax.random.PRNGKey(0)

        if num_layers == 1:
            dims = [(input_dim, output_dim)]
        else:
            dims = [(input_dim, hidden_dim)]
            dims += [(hidden_dim, hidden_dim)] * (num_layers - 2)
            dims += [(hidden_dim, output_dim)]

        # nn.Linear-style init: U(-1/sqrt(fan_in), 1/sqrt(fan_in)).
        self.weights_t = []   # (in, out), unpadded, for the pure-JAX reference
        self.biases = []
        for din, dout in dims:
            key, wk, bk = jax.random.split(key, 3)
            bound = 1.0 / (din ** 0.5)
            w = jax.random.uniform(wk, (dout, din), jnp.float32, -bound, bound)
            b = jax.random.uniform(bk, (dout,), jnp.float32, -bound, bound)
            self.weights_t.append(jnp.transpose(w))  # store as (in, out)
            self.biases.append(b)

        # Lane-dense, stacked, zero-padded parameters (built once).
        max_dim = max(max(d) for d in dims)
        self.dim_pad = _round_up(max_dim, _LANE)
        D, L = self.dim_pad, num_layers
        w_stack = jnp.zeros((L, D, D), jnp.float32)
        b_stack = jnp.zeros((L, 1, D), jnp.float32)
        for l, (din, dout) in enumerate(dims):
            w_stack = w_stack.at[l, :din, :dout].set(self.weights_t[l])
            b_stack = b_stack.at[l, 0, :dout].set(self.biases[l])
        self.w_stack = w_stack
        self.b_stack = b_stack

    def __call__(self, x):
        B, Din = x.shape
        assert Din == self.input_dim
        D = self.dim_pad
        Bp = _round_up(B, _SUBLANE)
        batch_tile = min(Bp, 256)
        Bp = _round_up(Bp, batch_tile)
        xp = jnp.zeros((Bp, D), jnp.float32).at[:B, :Din].set(
            x.astype(jnp.float32))
        out_p = fused_mlp_forward(xp, self.w_stack, self.b_stack,
                                  batch_tile=batch_tile,
                                  final_act=self.final_act)
        return out_p[:B, :self.output_dim]


if __name__ == "__main__":
    key = jax.random.PRNGKey(0)
    key, xk, pk, pk1 = jax.random.split(key, 4)

    batch, input_dim, hidden_dim, output_dim, num_layers = 8, 32, 32, 16, 3
    x = jax.random.normal(xk, (batch, input_dim), dtype=jnp.float32)

    def ref_forward(x, m, final_act):
        h = x
        for layer in range(m.num_layers - 1):
            h = jnp.maximum(h @ m.weights_t[layer] + m.biases[layer], 0.0)
        y = h @ m.weights_t[-1] + m.biases[-1]
        return jnp.maximum(y, 0.0) if final_act == "relu" else jax.nn.sigmoid(y)

    # Multi-layer MLP with sigmoid head.
    mlp = MLPPallas(num_layers, input_dim, hidden_dim, output_dim,
                    act="sigmoid", key=pk)
    out = jax.block_until_ready(mlp(x))
    ref = ref_forward(x, mlp, "sigmoid")
    assert out.shape == (batch, output_dim)
    # Slightly looser tolerance: final sigmoid uses the EUP approx reciprocal.
    assert jnp.allclose(out, ref, atol=2e-3, rtol=2e-3), float(
        jnp.max(jnp.abs(out - ref)))

    # num_layers == 1 path (pure linear model + sigmoid), same fused kernel.
    lin = MLPPallas(1, input_dim, output_dim, output_dim,
                    act="sigmoid", key=pk1)
    out1 = jax.block_until_ready(lin(x))
    ref1 = ref_forward(x, lin, "sigmoid")
    assert out1.shape == (batch, output_dim)
    assert jnp.allclose(out1, ref1, atol=2e-3, rtol=2e-3)

    print("KERNEL_OK")
</pallas_src>

<mosaic_0001>
module attributes {stable_mosaic.version = 11 : i64} {
  func.func @_fused_mlp_kernel(%arg0: i32, %arg1: i32, %arg2: memref<8x128xf32, #tpu.memory_space<vmem>>, %arg3: memref<1x128x128xf32, #tpu.memory_space<vmem>>, %arg4: memref<1x1x128xf32, #tpu.memory_space<vmem>>, %arg5: memref<8x128xf32, #tpu.memory_space<vmem>>, %arg6: memref<8x128xf32, #tpu.memory_space<vmem>>) attributes {dimension_semantics = [#tpu.dimension_semantics<parallel>, #tpu.dimension_semantics<arbitrary>], iteration_bounds = array<i64: 1, 3>, scalar_prefetch = 0 : i64, scratch_operands = 1 : i64, tpu.core_type = #tpu.core_type<tc>, window_params = [{transform_indices = @transform_0, window_bounds = array<i64: 8, 128>}, {transform_indices = @transform_1, window_bounds = array<i64: 1, 128, 128>}, {transform_indices = @transform_2, window_bounds = array<i64: 1, 1, 128>}, {transform_indices = @transform_3, window_bounds = array<i64: 8, 128>}]} {
    %c0_i32 = arith.constant 0 : i32
    %0 = arith.cmpi eq, %arg1, %c0_i32 : i32
    %1 = arith.extui %0 : i1 to i32
    %c0_i32_0 = arith.constant 0 : i32
    %2 = arith.cmpi ne, %1, %c0_i32_0 : i32
    scf.if %2 {
      %c0_11 = arith.constant 0 : index
      %c0_12 = arith.constant 0 : index
      %17 = vector.load %arg2[%c0_11, %c0_12] : memref<8x128xf32, #tpu.memory_space<vmem>>, vector<8x128xf32>
      %c0_13 = arith.constant 0 : index
      %c0_14 = arith.constant 0 : index
      %18 = vector.load %arg6[%c0_13, %c0_14] : memref<8x128xf32, #tpu.memory_space<vmem>>, vector<8x128xf32>
      tpu.vector_store %arg6[%c0_13, %c0_14], %17 {strides = array<i32>} : memref<8x128xf32, #tpu.memory_space<vmem>>, vector<8x128xf32>,
    } else {
    }
    %c0 = arith.constant 0 : index
    %c0_1 = arith.constant 0 : index
    %3 = vector.load %arg6[%c0, %c0_1] : memref<8x128xf32, #tpu.memory_space<vmem>>, vector<8x128xf32>
    %c0_2 = arith.constant 0 : index
    %c0_3 = arith.constant 0 : index
    %c0_4 = arith.constant 0 : index
    %4 = vector.load %arg3[%c0_2, %c0_3, %c0_4] : memref<1x128x128xf32, #tpu.memory_space<vmem>>, vector<1x128x128xf32>
    %5 = vector.shape_cast %4 : vector<1x128x128xf32> to vector<128x128xf32>
    %cst = arith.constant dense<0.000000e+00> : vector<8x128xf32>
    %6 = tpu.matmul %3, %5, %cst {dimension_numbers = #tpu.dot_dimension_numbers<[1], [0], [0], [1], [0, 0, 1, 1], [], []>} : vector<8x128xf32>, vector<128x128xf32>, vector<8x128xf32> -> vector<8x128xf32>
    %c0_5 = arith.constant 0 : index
    %c0_6 = arith.constant 0 : index
    %c0_7 = arith.constant 0 : index
    %7 = vector.load %arg4[%c0_5, %c0_6, %c0_7] : memref<1x1x128xf32, #tpu.memory_space<vmem>>, vector<1x1x128xf32>
    %8 = vector.shape_cast %7 : vector<1x1x128xf32> to vector<1x128xf32>
    %9 = vector.broadcast %8 : vector<1x128xf32> to vector<8x128xf32>
    %10 = arith.addf %6, %9 : vector<8x128xf32>
    %c2_i32 = arith.constant 2 : i32
    %11 = arith.cmpi ne, %arg1, %c2_i32 : i32
    %12 = arith.extui %11 : i1 to i32
    %c0_i32_8 = arith.constant 0 : i32
    %13 = arith.cmpi ne, %12, %c0_i32_8 : i32
    scf.if %13 {
      %cst_11 = arith.constant 0.000000e+00 : f32
      %17 = vector.broadcast %cst_11 : f32 to vector<8x128xf32>
      %18 = arith.maximumf %10, %17 : vector<8x128xf32>
      %c0_12 = arith.constant 0 : index
      %c0_13 = arith.constant 0 : index
      %19 = vector.load %arg6[%c0_12, %c0_13] : memref<8x128xf32, #tpu.memory_space<vmem>>, vector<8x128xf32>
      tpu.vector_store %arg6[%c0_12, %c0_13], %18 {strides = array<i32>} : memref<8x128xf32, #tpu.memory_space<vmem>>, vector<8x128xf32>,
    } else {
    }
    %c2_i32_9 = arith.constant 2 : i32
    %14 = arith.cmpi eq, %arg1, %c2_i32_9 : i32
    %15 = arith.extui %14 : i1 to i32
    %c0_i32_10 = arith.constant 0 : i32
    %16 = arith.cmpi ne, %15, %c0_i32_10 : i32
    scf.if %16 {
      %cst_11 = arith.constant 0.000000e+00 : f32
      %17 = vector.broadcast %cst_11 : f32 to vector<8x128xf32>
      %18 = arith.subf %17, %10 : vector<8x128xf32>
      %19 = math.exp %18 : vector<8x128xf32>
      %cst_12 = arith.constant 1.000000e+00 : f32
      %20 = vector.broadcast %cst_12 : f32 to vector<8x128xf32>
      %21 = arith.addf %20, %19 : vector<8x128xf32>
      %22 = tpu.reciprocal %21 {approx = true} : vector<8x128xf32> -> vector<8x128xf32>
      %c0_13 = arith.constant 0 : index
      %c0_14 = arith.constant 0 : index
      %23 = vector.load %arg5[%c0_13, %c0_14] : memref<8x128xf32, #tpu.memory_space<vmem>>, vector<8x128xf32>
      tpu.vector_store %arg5[%c0_13, %c0_14], %22 {strides = array<i32>} : memref<8x128xf32, #tpu.memory_space<vmem>>, vector<8x128xf32>,
    } else {
    }
    return
  }
  func.func @transform_0(%arg0: i32, %arg1: i32) -> (i32, i32) {
    %c0_i32 = arith.constant 0 : i32
    %c0_i32_0 = arith.constant 0 : i32
    return %arg0, %c0_i32 : i32, i32
  }
  func.func @transform_1(%arg0: i32, %arg1: i32) -> (i32, i32, i32) {
    %c0_i32 = arith.constant 0 : i32
    %c0_i32_0 = arith.constant 0 : i32
    %c0_i32_1 = arith.constant 0 : i32
    return %arg1, %c0_i32, %c0_i32_0 : i32, i32, i32
  }
  func.func @transform_2(%arg0: i32, %arg1: i32) -> (i32, i32, i32) {
    %c0_i32 = arith.constant 0 : i32
    %c0_i32_0 = arith.constant 0 : i32
    %c0_i32_1 = arith.constant 0 : i32
    return %arg1, %c0_i32, %c0_i32_0 : i32, i32, i32
  }
  func.func @transform_3(%arg0: i32, %arg1: i32) -> (i32, i32) {
    %c0_i32 = arith.constant 0 : i32
    %c0_i32_0 = arith.constant 0 : i32
    return %arg0, %c0_i32 : i32, i32
  }
}

</mosaic_0001>

<llo_original>
// kernel: tpu_custom_call.1
$region0: #{tpu_custom_call.1}
  #allocation0 [shape = 'u32[]', space=smem, size = 0x4, offset = 0x4, fixed_abs, tag = 'smem constant byte address 0x4 - core index']
  #allocation1 [shape = 'u32[144,128]{1,0:T(1,128)}', space=vmem, size = 0x12000, scoped, tag = 'internal scratch']
  #allocation2 [shape = 'f32[8,128]{1,0:T(8,128)}', space=vmem, size = 0x1000, scoped, tag = 'scratch operand']
  %s0 = inlined_call_operand.hbm [shape: f32[8,128], index: 0, kind: input, shape index: {}]
  %s1 = inlined_call_operand.hbm [shape: f32[3,128,128], index: 1, kind: input, shape index: {}]
  %s2 = inlined_call_operand.vmem [shape: f32[3,1,128], index: 2, kind: input, shape index: {}]
  %s3 = inlined_call_operand.hbm [shape: f32[8,128], index: 3, kind: output, shape index: {}]
  %s4 = sld [smem:[#allocation0]]
  $region65: #{tpu_custom_call.1} parent=0
    _
  %s6 = ssub.s32 1, %s4
  %s7 = scalar_select 0, %s6, %s4
  $region1: #{tpu_custom_call.1} parent=0
    #allocation3 [shape = 'u8[4096]{0}', space=vmem, size = 0x1000, scoped, tag = 'input window, operand 0, single buffered']
    #allocation4 [shape = 's32[2]{0}', space=sflag, size = 0x8, scoped, tag = 'scoped memory for tpu_custom_call.1']
    #allocation5 [shape = 's32[2]{0}', space=sflag, size = 0x8, scoped, tag = 'scoped memory for tpu_custom_call.1']
    #allocation6 [shape = 'u8[131072]{0}', space=vmem, size = 0x20000, scoped, tag = 'input window, operand 1']
    #allocation7 [shape = 's32[2]{0}', space=sflag, size = 0x8, scoped, tag = 'scoped memory for tpu_custom_call.1']
    #allocation8 [shape = 'u8[4096]{0}', space=vmem, size = 0x1000, scoped, tag = 'output window, operand 0, single buffered']
    %8 = vsyncpa [#allocation4], 0
    %9 = vsyncpa [#allocation7], 0
    %s10 = scalar_lea.sflag [#allocation7], 1
    %11 = vsyncpa %s10, 0
    %12 = vsyncpa [#allocation5], 0
    loop: start=0, step=1, limit=5
    $region2: #{tpu_custom_call.1} parent=1 // loop_pre_header
      _
    $region3: #{tpu_custom_call.1} parent=1 // loop_header
      %s14 = sphi 0, %s18
      %p15 = scmp.ge.s32.totalorder %s14, 5
      %s21 = sphi 0, %s33
      %s22 = sphi 0, %s29
      %s23 = sphi 0, %s21
      %s24 = sphi 0, %s22
      %s25 = sphi 0, %s23
      %s26 = sphi 0, %s24
      %s36 = sphi 0, %s38
      %s39 = sphi 0, %s36
      %s40 = sphi 0, %s39
      %s56 = sphi 0, %s40
      %s62 = sphi 0, %s64
      %s65 = sphi 0, %s62
      %s66 = sphi 0, %s65
      %s82 = sphi 0, %s66
      %s88 = sphi 0, %s90
      %s91 = sphi 0, %s88
      %s92 = sphi 0, %s91
      %s108 = sphi 0, %s92
      %s114 = sphi 0, %s116
      %s117 = sphi 0, %s114
      %s118 = sphi 0, %s117
      %s134 = sphi 0, %s118
    $region4: #{tpu_custom_call.1} parent=1 // loop_header_branch
      %17 = sbr.rel (%p15) target = $region8
    $region5: #{tpu_custom_call.1} parent=1 // loop_body
      %s19 = ssub.s32 %s14, 1
      %s20 = ssub.s32 %s14, 2
      %s27 = sadd.s32 1, %s22
      %p28 = scmp.ge.s32.totalorder %s27, 3
      %s29 = scalar_select %p28, 0, %s27
      %s30 = sadd.s32 1, %s21
      %s31 = scalar_select %p28, %s30, %s21
      %p32 = scmp.ge.s32.totalorder %s31, 1
      %s33 = scalar_select %p32, 0, %s31
      %s34 = ssub.s32 %s21, %s33
      %p35 = scmp.eq.s32.totalorder %s34, 0
      %s37 = sadd.s32 %s36, 1
      %s38 = scalar_select %p35, %s36, %s37
      %p41 = pneg %p35
      %p42 = scmp.eq.s32.totalorder %s14, 2
      %p43 = por %p41, %p42
      %p44 = scmp.ne.s32.totalorder %s36, %s39
      %p45 = scmp.eq.s32.totalorder %s14, 0
      %p46 = por %p44, %p45
      %p47 = scmp.ne.s32.totalorder %s36, %s39
      %p48 = scmp.eq.s32.totalorder %s19, 2
      %p49 = por %p47, %p48
      %p50 = scmp.ne.s32.totalorder %s39, %s40
      %p51 = scmp.eq.s32.totalorder %s19, 0
      %p52 = por %p50, %p51
      %p53 = scmp.ne.s32.totalorder %s39, %s40
      %p54 = scmp.eq.s32.totalorder %s20, 2
      %p55 = por %p53, %p54
      %p57 = scmp.ne.s32.totalorder %s40, %s56
      %p58 = scmp.eq.s32.totalorder %s20, 0
      %p59 = por %p57, %p58
      %s60 = ssub.s32 %s22, %s29
      %p61 = scmp.eq.s32.totalorder %s60, 0
      %s63 = sadd.s32 %s62, 1
      %s64 = scalar_select %p61, %s62, %s63
      %p67 = pneg %p61
      %p68 = scmp.eq.s32.totalorder %s14, 2
      %p69 = por %p67, %p68
      %p70 = scmp.ne.s32.totalorder %s62, %s65
      %p71 = scmp.eq.s32.totalorder %s14, 0
      %p72 = por %p70, %p71
      %p73 = scmp.ne.s32.totalorder %s62, %s65
      %p74 = scmp.eq.s32.totalorder %s19, 2
      %p75 = por %p73, %p74
      %p76 = scmp.ne.s32.totalorder %s65, %s66
      %p77 = scmp.eq.s32.totalorder %s19, 0
      %p78 = por %p76, %p77
      %p79 = scmp.ne.s32.totalorder %s65, %s66
      %p80 = scmp.eq.s32.totalorder %s20, 2
      %p81 = por %p79, %p80
      %p83 = scmp.ne.s32.totalorder %s66, %s82
      %p84 = scmp.eq.s32.totalorder %s20, 0
      %p85 = por %p83, %p84
      %s86 = ssub.s32 %s22, %s29
      %p87 = scmp.eq.s32.totalorder %s86, 0
      %s89 = sadd.s32 %s88, 1
      %s90 = scalar_select %p87, %s88, %s89
      %p93 = pneg %p87
      %p94 = scmp.eq.s32.totalorder %s14, 2
      %p95 = por %p93, %p94
      %p96 = scmp.ne.s32.totalorder %s88, %s91
      %p97 = scmp.eq.s32.totalorder %s14, 0
      %p98 = por %p96, %p97
      %p99 = scmp.ne.s32.totalorder %s88, %s91
      %p100 = scmp.eq.s32.totalorder %s19, 2
      %p101 = por %p99, %p100
      %p102 = scmp.ne.s32.totalorder %s91, %s92
      %p103 = scmp.eq.s32.totalorder %s19, 0
      %p104 = por %p102, %p103
      %p105 = scmp.ne.s32.totalorder %s91, %s92
      %p106 = scmp.eq.s32.totalorder %s20, 2
      %p107 = por %p105, %p106
      %p109 = scmp.ne.s32.totalorder %s92, %s108
      %p110 = scmp.eq.s32.totalorder %s20, 0
      %p111 = por %p109, %p110
      %s112 = ssub.s32 %s21, %s33
      %p113 = scmp.eq.s32.totalorder %s112, 0
      %s115 = sadd.s32 %s114, 1
      %s116 = scalar_select %p113, %s114, %s115
      %p119 = pneg %p113
      %p120 = scmp.eq.s32.totalorder %s14, 2
      %p121 = por %p119, %p120
      %p122 = scmp.ne.s32.totalorder %s114, %s117
      %p123 = scmp.eq.s32.totalorder %s14, 0
      %p124 = por %p122, %p123
      %p125 = scmp.ne.s32.totalorder %s114, %s117
      %p126 = scmp.eq.s32.totalorder %s19, 2
      %p127 = por %p125, %p126
      %p128 = scmp.ne.s32.totalorder %s117, %s118
      %p129 = scmp.eq.s32.totalorder %s19, 0
      %p130 = por %p128, %p129
      %p131 = scmp.ne.s32.totalorder %s117, %s118
      %p132 = scmp.eq.s32.totalorder %s20, 2
      %p133 = por %p131, %p132
      %p135 = scmp.ne.s32.totalorder %s118, %s134
      %p136 = scmp.eq.s32.totalorder %s20, 0
      %p137 = por %p135, %p136
      %p138 = scmp.le.s32.totalorder 1, %s14
      %p139 = scmp.lt.s32.totalorder %s14, 4
      %p140 = pnand %p138, %p139
      %p141 = pneg %p140
      // Predicated region
      $region9: #{tpu_custom_call.1} parent=5 // pred_check
        _
      $region10: #{tpu_custom_call.1} parent=5 // pred_check_branch
        %143 = sbr.rel (%p140) target = $region12
      $region11: #{tpu_custom_call.1} parent=5 // pred_region
        %s144 = ssub.s32 %s14, 1
        // Predicated region
        $region13: #{tpu_custom_call.1} parent=11 // pred_check
          %p145 = pneg %p52
        $region14: #{tpu_custom_call.1} parent=11 // pred_check_branch
          %147 = sbr.rel (%p145) target = $region16
        $region15: #{tpu_custom_call.1} parent=11 // pred_region
          %s149 = ssub.s32 128, 128
          %150 = vsyncadd [#allocation4], %s149
          %s151 = smul.addr %s23, 128
          %s152 = scalar_lea.hbm %s0, %s151
          %s154 = sshll.u32 [#allocation3], 4
          %s155 = int_to_ptr.vmem [resolvable:$true] %s154
          %157 = dma.hbm_to_vmem [thread:$0]  %s152, 128, %s155, [#allocation4]
        $region16: #{tpu_custom_call.1} parent=11 // pred_fallthru
          _
      $region12: #{tpu_custom_call.1} parent=5 // pred_fallthru
        _
      %p158 = scmp.lt.s32.totalorder %s14, 3
      // Predicated region
      $region17: #{tpu_custom_call.1} parent=5 // pred_check
        %p159 = pneg %p158
      $region18: #{tpu_custom_call.1} parent=5 // pred_check_branch
        %161 = sbr.rel (%p159) target = $region20
      $region19: #{tpu_custom_call.1} parent=5 // pred_region
        // Predicated region
        $region21: #{tpu_custom_call.1} parent=19 // pred_check
          %p162 = pneg %p72
        $region22: #{tpu_custom_call.1} parent=19 // pred_check_branch
          %164 = sbr.rel (%p162) target = $region24
        $region23: #{tpu_custom_call.1} parent=19 // pred_region
          %s165 = sand.u32 %s62, 1
          %s166 = scalar_lea.sflag [#allocation7], %s165
          %s167 = sand.u32 %s62, 1
          %s168 = smul.addr %s167, 128
          %s169 = scalar_lea.vmem [#allocation6], %s168
          %s171 = ssub.s32 2048, 2048
          %172 = vsyncadd %s166, %s171
          %s173 = smul.addr %s22, 16
          %s174 = smul.addr %s173, 128
          %s175 = scalar_lea.hbm %s1, %s174
          %s176 = sshll.u32 %s169, 4
          %s177 = int_to_ptr.vmem [resolvable:$true] %s176
          %182 = dma.hbm_to_vmem [thread:$0]  %s175, 2048, %s177, %s166, 128, 128, 8
        $region24: #{tpu_custom_call.1} parent=19 // pred_fallthru
          _
        // Predicated region
        $region25: #{tpu_custom_call.1} parent=19 // pred_check
          %p183 = pneg %p98
        $region26: #{tpu_custom_call.1} parent=19 // pred_check_branch
          %185 = sbr.rel (%p183) target = $region28
        $region27: #{tpu_custom_call.1} parent=19 // pred_region
          %p186 = scmp.lt.s32.totalorder %s22, 2
          %s187 = scalar_select %p186, %s22, 2
          %s188 = scalar_lea.vmem %s2, %s187
        $region28: #{tpu_custom_call.1} parent=19 // pred_fallthru
          _
      $region20: #{tpu_custom_call.1} parent=5 // pred_fallthru
        _
      %p189 = scmp.le.s32.totalorder 1, %s14
      %p190 = scmp.lt.s32.totalorder %s14, 4
      %p191 = pnand %p189, %p190
      %p192 = pneg %p191
      // Predicated region
      $region29: #{tpu_custom_call.1} parent=5 // pred_check
        _
      $region30: #{tpu_custom_call.1} parent=5 // pred_check_branch
        %194 = sbr.rel (%p191) target = $region32
      $region31: #{tpu_custom_call.1} parent=5 // pred_region
        %s195 = ssub.s32 %s14, 1
        // Predicated region
        $region33: #{tpu_custom_call.1} parent=31 // pred_check
          %p196 = pneg %p52
        $region34: #{tpu_custom_call.1} parent=31 // pred_check_branch
          %198 = sbr.rel (%p196) target = $region36
        $region35: #{tpu_custom_call.1} parent=31 // pred_region
          %199 = dma.done [#allocation4], 128
        $region36: #{tpu_custom_call.1} parent=31 // pred_fallthru
          _
        %s200 = sand.u32 %s65, 1
        %s201 = scalar_lea.sflag [#allocation7], %s200
        %s202 = sand.u32 %s65, 1
        %s203 = smul.addr %s202, 128
        %s204 = scalar_lea.vmem [#allocation6], %s203
        // Predicated region
        $region37: #{tpu_custom_call.1} parent=31 // pred_check
          %p205 = pneg %p78
        $region38: #{tpu_custom_call.1} parent=31 // pred_check_branch
          %207 = sbr.rel (%p205) target = $region40
        $region39: #{tpu_custom_call.1} parent=31 // pred_region
          %208 = dma.done %s201, 2048
        $region40: #{tpu_custom_call.1} parent=31 // pred_fallthru
          _
        %p209 = pneg %p52
        %p210 = pneg %p49
        %s211 = sand.u32 %s65, 1
        %s212 = scalar_lea.sflag [#allocation7], %s211
        %s213 = sand.u32 %s65, 1
        %s214 = smul.addr %s213, 128
        %s215 = scalar_lea.vmem [#allocation6], %s214
        %p216 = pneg %p78
        %p217 = pneg %p75
        %p218 = scmp.lt.s32.totalorder %s24, 2
        %s219 = scalar_select %p218, %s24, 2
        %s220 = scalar_lea.vmem %s2, %s219
        %p221 = pneg %p104
        %p222 = pneg %p101
        %p223 = pneg %p130
        %p224 = pneg %p127
        %p225 = scmp.lt.s32.totalorder %s24, 2
        %s226 = scalar_select %p225, %s24, 2
        %s227 = scalar_lea.vmem %s2, %s226
        %p228 = scmp.eq.s32.totalorder %s24, 0
        // Predicated region
        $region41: #{tpu_custom_call.1} parent=31 // pred_check
          %p229 = pneg %p228
        $region42: #{tpu_custom_call.1} parent=31 // pred_check_branch
          %231 = sbr.rel (%p229) target = $region44
        $region43: #{tpu_custom_call.1} parent=31 // pred_region
          %v232 = vld [vmem:[#allocation3] sm:$0xff]
          %233 = vst [vmem:[#allocation2] sm:$0xff] %v232
        $region44: #{tpu_custom_call.1} parent=31 // pred_fallthru
          _
        %v234 = vld [vmem:[#allocation2] sm:$0xff]
        %v235 = vld [vmem:[%s204] sm:$0xff]
        %v236 = vld [vmem:[%s204 + $0x8] sm:$0xff]
        %v237 = vld [vmem:[%s204 + $0x10] sm:$0xff]
        %v238 = vld [vmem:[%s204 + $0x18] sm:$0xff]
        %v239 = vld [vmem:[%s204 + $0x20] sm:$0xff]
        %v240 = vld [vmem:[%s204 + $0x28] sm:$0xff]
        %v241 = vld [vmem:[%s204 + $0x30] sm:$0xff]
        %v242 = vld [vmem:[%s204 + $0x38] sm:$0xff]
        %v243 = vld [vmem:[%s204 + $0x40] sm:$0xff]
        %v244 = vld [vmem:[%s204 + $0x48] sm:$0xff]
        %v245 = vld [vmem:[%s204 + $0x50] sm:$0xff]
        %v246 = vld [vmem:[%s204 + $0x58] sm:$0xff]
        %v247 = vld [vmem:[%s204 + $0x60] sm:$0xff]
        %v248 = vld [vmem:[%s204 + $0x68] sm:$0xff]
        %v249 = vld [vmem:[%s204 + $0x70] sm:$0xff]
        %v250 = vld [vmem:[%s204 + $0x78] sm:$0xff]
        %v251 = vld [vmem:[%s227] sm:$0x1]
        %v253 = vlaneseq
        %v254 = vshrl.u32 %v253, 7
        %v255 = vsub.s32 0, %v254
        %v256 = vrot.slane %v251, %v255
        %258 = vmatprep.subr.mxu0 0.0
        %259 = vmatpush1.msra.mxu0 %v235
        %260 = vmatprep.subr.mxu0 0.0
        %261 = vmatpush1.msra.mxu0 %v236
        %262 = vmatprep.subr.mxu0 0.0
        %263 = vmatpush1.msra.mxu0 %v237
        %264 = vmatprep.subr.mxu0 0.0
        %265 = vmatpush1.msra.mxu0 %v238
        %266 = vmatprep.subr.mxu0 0.0
        %267 = vmatpush1.msra.mxu0 %v239
        %268 = vmatprep.subr.mxu0 0.0
        %269 = vmatpush1.msra.mxu0 %v240
        %270 = vmatprep.subr.mxu0 0.0
        %271 = vmatpush1.msra.mxu0 %v241
        %272 = vmatprep.subr.mxu0 0.0
        %273 = vmatpush1.msra.mxu0 %v242
        %274 = vmatprep.subr.mxu0 0.0
        %275 = vmatpush1.msra.mxu0 %v243
        %276 = vmatprep.subr.mxu0 0.0
        %277 = vmatpush1.msra.mxu0 %v244
        %278 = vmatprep.subr.mxu0 0.0
        %279 = vmatpush1.msra.mxu0 %v245
        %280 = vmatprep.subr.mxu0 0.0
        %281 = vmatpush1.msra.mxu0 %v246
        %282 = vmatprep.subr.mxu0 0.0
        %283 = vmatpush1.msra.mxu0 %v247
        %284 = vmatprep.subr.mxu0 0.0
        %285 = vmatpush1.msra.mxu0 %v248
        %286 = vmatprep.subr.mxu0 0.0
        %287 = vmatpush1.msra.mxu0 %v249
        %288 = vmatprep.subr.mxu0 0.0
        %289 = vmatpush1.msra.mxu0 %v250
        %290 = vmatprep.subr.mxu0 0.0
        %291 = vmatpush1.msra.mxu0 0.0
        %292 = vmatprep.subr.mxu0 0.0
        %293 = vmatpush1.msra.mxu0 0.0
        %294 = vmatprep.subr.mxu0 0.0
        %295 = vmatpush1.msra.mxu0 0.0
        %296 = vmatprep.subr.mxu0 0.0
        %297 = vmatpush1.msra.mxu0 0.0
        %298 = vmatprep.subr.mxu0 0.0
        %299 = vmatpush1.msra.mxu0 0.0
        %300 = vmatprep.subr.mxu0 0.0
        %301 = vmatpush1.msra.mxu0 0.0
        %302 = vmatprep.subr.mxu0 0.0
        %303 = vmatpush1.msra.mxu0 0.0
        %304 = vmatprep.subr.mxu0 0.0
        %305 = vmatpush1.msra.mxu0 0.0
        %306 = vmatprep.subr.mxu0 0.0
        %307 = vmatpush1.msra.mxu0 0.0
        %308 = vmatprep.subr.mxu0 0.0
        %309 = vmatpush1.msra.mxu0 0.0
        %310 = vmatprep.subr.mxu0 0.0
        %311 = vmatpush1.msra.mxu0 0.0
        %312 = vmatprep.subr.mxu0 0.0
        %313 = vmatpush1.msra.mxu0 0.0
        %314 = vmatprep.subr.mxu0 0.0
        %315 = vmatpush1.msra.mxu0 0.0
        %316 = vmatprep.subr.mxu0 0.0
        %317 = vmatpush1.msra.mxu0 0.0
        %318 = vmatprep.subr.mxu0 0.0
        %319 = vmatpush1.msra.mxu0 0.0
        %320 = vmatprep.subr.mxu0 0.0
        %321 = vmatpush1.msra.mxu0 0.0
        %322 = vmatprep.mubr.f32.mxu0 0.0
        %323 = vmatmul.mubr.f32.gmra.mrb[0].mxu0 %v234
        %v324 = vpop.f32.mrb[0].mxu0
        %v325 = vadd.f32 %v256, %v324
        %v326 = vpop.f32.mrb[0].mxu0
        %327 = vdwg.mxu0
        %p328 = scmp.ne.s32.totalorder %s24, 2
        // Predicated region
        $region45: #{tpu_custom_call.1} parent=31 // pred_check
          %p329 = pneg %p328
        $region46: #{tpu_custom_call.1} parent=31 // pred_check_branch
          %331 = sbr.rel (%p329) target = $region48
        $region47: #{tpu_custom_call.1} parent=31 // pred_region
          %v332 = vmax.f32 %v325, 0.0
          %333 = vst [vmem:[#allocation2] sm:$0xff] %v332
        $region48: #{tpu_custom_call.1} parent=31 // pred_fallthru
          _
        %p334 = scmp.eq.s32.totalorder %s24, 2
        // Predicated region
        $region49: #{tpu_custom_call.1} parent=31 // pred_check
          %p335 = pneg %p334
        $region50: #{tpu_custom_call.1} parent=31 // pred_check_branch
          %337 = sbr.rel (%p335) target = $region52
        $region51: #{tpu_custom_call.1} parent=31 // pred_region
          %v338 = vsub.f32 0.0, %v325
          %v339 = vmul.f32 %v338, 1.442695
          %v340 = vpow.pop %v339
          %v341 = vadd.f32 %v340, 1.0
          %v342 = vrcp.pop %v341
          %343 = vst [vmem:[#allocation8] sm:$0xff] %v342
        $region52: #{tpu_custom_call.1} parent=31 // pred_fallthru
          _
        // Predicated region
        $region53: #{tpu_custom_call.1} parent=31 // pred_check
          %p344 = pneg %p127
        $region54: #{tpu_custom_call.1} parent=31 // pred_check_branch
          %346 = sbr.rel (%p344) target = $region56
        $region55: #{tpu_custom_call.1} parent=31 // pred_region
          %s348 = ssub.s32 128, 128
          %349 = vsyncadd [#allocation5], %s348
          %s350 = smul.addr %s23, 128
          %s351 = scalar_lea.hbm %s3, %s350
          %s353 = sshll.u32 [#allocation8], 4
          %s354 = int_to_ptr.vmem [resolvable:$true] %s353
          %356 = dma.vmem_to_hbm [thread:$0]  %s354, 128, %s351, [#allocation5]
        $region56: #{tpu_custom_call.1} parent=31 // pred_fallthru
          _
        // Predicated region
        $region57: #{tpu_custom_call.1} parent=31 // pred_check
          %p357 = pneg %p127
        $region58: #{tpu_custom_call.1} parent=31 // pred_check_branch
          %359 = sbr.rel (%p357) target = $region60
        $region59: #{tpu_custom_call.1} parent=31 // pred_region
          %360 = dma.done [#allocation5], 128
        $region60: #{tpu_custom_call.1} parent=31 // pred_fallthru
          _
      $region32: #{tpu_custom_call.1} parent=5 // pred_fallthru
        _
      %p361 = scmp.le.s32.totalorder 2, %s14
      // Predicated region
      $region61: #{tpu_custom_call.1} parent=5 // pred_check
        %p362 = pneg %p361
      $region62: #{tpu_custom_call.1} parent=5 // pred_check_branch
        %364 = sbr.rel (%p362) target = $region64
      $region63: #{tpu_custom_call.1} parent=5 // pred_region
        %s365 = ssub.s32 %s14, 2
      $region64: #{tpu_custom_call.1} parent=5 // pred_fallthru
        _
    $region6: #{tpu_custom_call.1} parent=1 // loop_footer
      %s18 = sadd.s32 1, %s14
    $region7: #{tpu_custom_call.1} parent=1 // loop_footer_branch
      %13 = sbr.rel target = $region3
    $region8: #{tpu_custom_call.1} parent=1 // loop_exit
      _
    %366 = vsyncpa [#allocation4], 1
    %s367 = scalar_lea.sflag [#allocation4], 1
    %368 = vsyncpa %s367, 1
    %369 = vsyncpa [#allocation7], 1
    %s370 = scalar_lea.sflag [#allocation7], 1
    %371 = vsyncpa %s370, 1
    %372 = vsyncpa [#allocation5], 1
    %s373 = scalar_lea.sflag [#allocation5], 1
    %374 = vsyncpa %s373, 1

</llo_original>
